<compile_context>
chip_gen: v6e
topology: v6e:2x2x1
jax: 0.10.0
libtpu: 0.0.40
codegen_flags: <defaults>
</compile_context>

<pallas_src>
import functools

import jax
import jax.numpy as jnp
from jax.experimental import pallas as pl
from jax.experimental.pallas import tpu as pltpu


def _round_up(n, m):
    return ((n + m - 1) // m) * m


def _cdiv(a, b):
    return -(-a // b)


def _grn_kernel(xc_ref, w1c_ref, w2_ref, wg_ref, bh_ref, pp_ref, o_ref, *,
                in_size, out_size):
    f32 = jnp.float32
    out_p = o_ref.shape[-1]          # lane-padded output width (multiple of 128)

    xc = xc_ref[...]                 # (rt, in+ctx), compute dtype (bf16)

    b1 = bh_ref[0:1, :].astype(f32)
    b2 = bh_ref[1:2, :].astype(f32)
    bga = pp_ref[0:1, :].astype(f32)
    bgb = pp_ref[1:2, :].astype(f32)
    gamma = pp_ref[2:3, :].astype(f32)
    beta = pp_ref[3:4, :].astype(f32)

    # fused fc1 + bias-free context projection: [x | ctx] @ [[W1]; [Wc]]
    h = jnp.dot(xc, w1c_ref[...], preferred_element_type=f32) + b1

    # ELU (alpha = 1); zero-padded hidden lanes stay exactly 0 (ELU(0) = 0)
    h = jnp.where(h > 0, h, jnp.exp(h) - 1.0)

    # fc2
    h = jnp.dot(h.astype(w2_ref.dtype), w2_ref[...],
                preferred_element_type=f32) + b2

    # GatedLinearUnit: one fused (hid_p, 2*out_p) matmul; out_p is 128-aligned
    # so the value/gate split is a lane-aligned (free) slice.
    g = jnp.dot(h.astype(wg_ref.dtype), wg_ref[...],
                preferred_element_type=f32)
    ga = g[:, :out_p] + bga
    gb = g[:, out_p:] + bgb
    glu = ga * jax.nn.sigmoid(gb)

    # AddNorm: residual is (re)read from the VMEM tile at the point of use so
    # no rt x in f32 tensor stays live across the matmuls above.
    res = xc[:, :in_size].astype(f32)
    if out_p != in_size:
        res = jnp.pad(res, ((0, 0), (0, out_p - in_size)))
    y = glu + res                    # padded lanes are exactly zero

    # LayerNorm over the real out_size lanes only.
    inv_n = 1.0 / out_size
    mean = jnp.sum(y, axis=-1, keepdims=True) * inv_n
    d = y - mean
    if out_p != out_size:
        lane = jax.lax.broadcasted_iota(jnp.int32, y.shape, 1)
        d = jnp.where(lane < out_size, d, 0.0)
    var = jnp.sum(d * d, axis=-1, keepdims=True) * inv_n
    o_ref[...] = (d * jax.lax.rsqrt(var + 1e-5) * gamma + beta).astype(o_ref.dtype)


@functools.partial(
    jax.jit,
    static_argnames=("row_tile", "compute_dtype", "out_dtype",
                     "single_buffer_weights"))
def grn_forward(x, context, params, *, row_tile=None,
                compute_dtype=jnp.bfloat16, out_dtype=None,
                single_buffer_weights=True):
    """x: (B, T, input_size), context: (B, T, context_size) -> (B, T, output_size)."""
    B, T, in_size = x.shape
    ctx_size = context.shape[-1]
    hid = params["w1"].shape[1]
    out_size = params["gamma"].shape[-1]
    assert in_size == out_size, (
        "ResampleNorm branch (input_size != output_size) is not implemented")
    n_rows = B * T
    cd = jnp.dtype(compute_dtype)
    od = jnp.dtype(out_dtype) if out_dtype is not None else x.dtype

    # ---- per-generation VMEM budget -----------------------------------------
    # v5e/v6e: 128 MiB per TC, v7x: 64 MiB.  Keep ~1/8 headroom for the
    # compiler's internal scratch and never request 100% of physical VMEM.
    try:
        phys_vmem = int(pltpu.get_tpu_info().vmem_capacity_bytes)
    except Exception:
        phys_vmem = 64 << 20                       # conservative (v7x-sized)
    vmem_cap = (phys_vmem * 7) // 8

    # ---- lane-align hidden / output dims ------------------------------------
    LANE = 128
    hid_p = _round_up(hid, LANE)
    out_p = _round_up(out_size, LANE)

    # ---- one-time parameter prep (plain XLA, negligible cost) ---------------
    def pad2(a, r, c):
        return jnp.pad(a, ((0, r - a.shape[0]), (0, c - a.shape[1])))

    w1c = pad2(jnp.concatenate([params["w1"], params["wc"]], axis=0),
               in_size + ctx_size, hid_p).astype(cd)                 # (in+ctx, hid_p)
    w2 = pad2(params["w2"], hid_p, hid_p).astype(cd)                 # (hid_p, hid_p)
    wg = jnp.concatenate(
        [pad2(params["wg"][:, :out_size], hid_p, out_p),
         pad2(params["wg"][:, out_size:], hid_p, out_p)],
        axis=1).astype(cd)                                           # (hid_p, 2*out_p)
    bias_h = pad2(jnp.concatenate([params["b1"], params["b2"]], axis=0),
                  2, hid_p).astype(jnp.float32)                      # (2, hid_p)
    post = jnp.concatenate(
        [pad2(params["bg"][:, :out_size], 1, out_p),
         pad2(params["bg"][:, out_size:], 1, out_p),
         pad2(params["gamma"], 1, out_p),
         pad2(params["beta"], 1, out_p)],
        axis=0).astype(jnp.float32)                                  # (4, out_p)

    # streamed rows: concat features so fc1 + context projection is one matmul
    xc = jnp.concatenate(
        [x.reshape(n_rows, in_size), context.reshape(n_rows, ctx_size)],
        axis=-1).astype(cd)

    # ---- row-tile selection (footprint-scaled, VMEM-bounded, balanced) ------
    nbytes = lambda a: a.size * a.dtype.itemsize
    weight_bytes = sum(map(nbytes, (w1c, w2, wg, bias_h, post)))
    row_stream = (in_size + ctx_size) * cd.itemsize + out_p * od.itemsize
    row_vmem = 2 * row_stream + 6 * max(hid_p, 2 * out_p) * 4   # dbl-buffered tiles + f32 temps
    vmem_budget = vmem_cap - 2 * weight_bytes - (2 << 20)
    rt_vmem_max = max(8, vmem_budget // row_vmem)
    if row_tile is None:
        row_tile = max(8, (4 << 20) // row_stream)   # ~4 MiB streamed per grid step
    rt_max = int(max(8, min(row_tile, rt_vmem_max)))

    row_align = 16 if cd.itemsize == 2 else 8        # bf16 sublane packing
    num_tiles = max(1, _cdiv(n_rows, rt_max))
    if n_rows >= 2 * row_align:
        num_tiles = max(num_tiles, 2)                # >=2 steps so v7x can use both TCs
    rt = _round_up(_cdiv(n_rows, num_tiles), row_align)   # balanced tiles, minimal pad
    rows_padded = rt * num_tiles
    if rows_padded != n_rows:
        xc = jnp.pad(xc, ((0, rows_padded - n_rows), (0, 0)))
    grid = (num_tiles,)

    # ---- scheduler hint ------------------------------------------------------
    flops = 2 * rows_padded * ((in_size + ctx_size) * hid_p + hid_p * hid_p
                               + hid_p * 2 * out_p)
    cost = pl.CostEstimate(
        flops=int(flops),
        # exp (ELU) + ~2 EUP ops per sigmoid + rsqrt per row
        transcendentals=int(rows_padded * (hid_p + 2 * out_p + 1)),
        bytes_accessed=int(nbytes(xc)
                           + rows_padded * out_p * od.itemsize
                           + weight_bytes))

    # ---- VMEM limit: always set, per-generation cap --------------------------
    need = rt * row_vmem + 2 * weight_bytes
    vmem_limit = int(min(vmem_cap,
                         max(32 << 20, _round_up(need + (need >> 2), 1 << 20))))

    def const_spec(shape):
        # Constant-index weight operands: single-buffer them so resident
        # weights do not pay a 2x VMEM cost (their block never changes).
        if single_buffer_weights:
            return pl.BlockSpec(shape, lambda i: (0, 0),
                                pipeline_mode=pl.Buffered(1))
        return pl.BlockSpec(shape, lambda i: (0, 0))

    out = pl.pallas_call(
        functools.partial(_grn_kernel, in_size=in_size, out_size=out_size),
        out_shape=jax.ShapeDtypeStruct((rows_padded, out_p), od),
        grid_spec=pltpu.PrefetchScalarGridSpec(
            num_scalar_prefetch=0,
            grid=grid,
            in_specs=[
                pl.BlockSpec((rt, in_size + ctx_size), lambda i: (i, 0)),  # streamed [x|ctx]
                const_spec((in_size + ctx_size, hid_p)),   # fused fc1 + context weight
                const_spec((hid_p, hid_p)),                # fc2 weight
                const_spec((hid_p, 2 * out_p)),            # fused GLU weight
                const_spec((2, hid_p)),                    # packed b1 / b2
                const_spec((4, out_p)),                    # packed bg_a / bg_b / gamma / beta
            ],
            out_specs=pl.BlockSpec((rt, out_p), lambda i: (i, 0)),
        ),
        compiler_params=pltpu.CompilerParams(
            dimension_semantics=("parallel",),
            vmem_limit_bytes=vmem_limit),
        cost_estimate=cost,
    )(xc, w1c, w2, wg, bias_h, post)

    return out[:n_rows, :out_size].reshape(B, T, out_size)


def init_params(key, input_size, hidden_size, output_size, context_size):
    """Deterministic init mirroring the module: kaiming-normal fc weights,
    xavier-uniform context weight, zero biases, LayerNorm (ones, zeros).
    Weights are stored transposed ((in, out)) for direct x @ W matmuls."""
    k1, k2, k3, k4 = jax.random.split(key, 4)

    def kaiming(k, fan_in, fan_out):
        std = (2.0 / fan_in) ** 0.5  # gain sqrt(2) for leaky_relu(a=0), fan_in mode
        return std * jax.random.normal(k, (fan_in, fan_out), jnp.float32)

    def xavier(k, fan_in, fan_out):
        lim = (6.0 / (fan_in + fan_out)) ** 0.5
        return jax.random.uniform(k, (fan_in, fan_out), jnp.float32, -lim, lim)

    return {
        "w1": kaiming(k1, input_size, hidden_size),
        "b1": jnp.zeros((1, hidden_size), jnp.float32),
        "wc": xavier(k2, context_size, hidden_size),
        "w2": kaiming(k3, hidden_size, hidden_size),
        "b2": jnp.zeros((1, hidden_size), jnp.float32),
        "wg": kaiming(k4, hidden_size, 2 * output_size),  # GLU fc
        "bg": jnp.zeros((1, 2 * output_size), jnp.float32),
        "gamma": jnp.ones((1, output_size), jnp.float32),
        "beta": jnp.zeros((1, output_size), jnp.float32),
    }


if __name__ == "__main__":
    # Small shapes: batch=2, seq=8, input=output=32, hidden=32, context=16
    B, T = 2, 8
    INPUT, HIDDEN, OUTPUT, CONTEXT = 32, 32, 32, 16

    key = jax.random.PRNGKey(0)
    kx, kc, kp = jax.random.split(key, 3)
    x = jax.random.normal(kx, (B, T, INPUT), jnp.float32)
    context = jax.random.normal(kc, (B, T, CONTEXT), jnp.float32)
    params = init_params(kp, INPUT, HIDDEN, OUTPUT, CONTEXT)

    def run(single_buffer):
        o = grn_forward(x, context, params, single_buffer_weights=single_buffer)
        return jax.block_until_ready(o)

    # pl.Buffered(1) (single-buffered resident weights) is a newer Pallas
    # feature; fall back transparently if this JAX/libtpu combo rejects it.
    try:
        out = run(True)
    except Exception:
        out = run(False)
    assert out.shape == (B, T, OUTPUT)

    # Pure-JAX reference.  matmul_dtype=bf16 mirrors the kernel's dtype flow
    # exactly (bf16 matmul operands, f32 accumulation / elementwise math);
    # matmul_dtype=f32 is the original full-precision module semantics.
    def ref(x, c, p, matmul_dtype):
        md = matmul_dtype
        xc = jnp.concatenate([x, c], axis=-1).astype(md)
        w1c = jnp.concatenate([p["w1"], p["wc"]], axis=0).astype(md)
        h = jnp.dot(xc, w1c, preferred_element_type=jnp.float32) + p["b1"]
        h = jnp.where(h > 0, h, jnp.exp(h) - 1.0)
        h = jnp.dot(h.astype(md), p["w2"].astype(md),
                    preferred_element_type=jnp.float32) + p["b2"]
        hb = h.astype(md)
        ga = jnp.dot(hb, p["wg"][:, :OUTPUT].astype(md),
                     preferred_element_type=jnp.float32) + p["bg"][:, :OUTPUT]
        gb = jnp.dot(hb, p["wg"][:, OUTPUT:].astype(md),
                     preferred_element_type=jnp.float32) + p["bg"][:, OUTPUT:]
        glu = ga * jax.nn.sigmoid(gb)
        y = glu + xc[..., :INPUT].astype(jnp.float32)
        mu = y.mean(-1, keepdims=True)
        var = ((y - mu) ** 2).mean(-1, keepdims=True)
        return (y - mu) / jnp.sqrt(var + 1e-5) * p["gamma"] + p["beta"]

    ref_bf16 = ref(x, context, params, jnp.bfloat16)   # same dtype flow as kernel
    ref_f32 = ref(x, context, params, jnp.float32)     # full-precision module semantics

    assert jnp.allclose(out, ref_bf16, atol=5e-3, rtol=5e-3), \
        float(jnp.max(jnp.abs(out - ref_bf16)))
    # loose sanity check against the f32 module (difference is bf16 rounding only)
    assert jnp.allclose(out, ref_f32, atol=1.5e-1, rtol=5e-2), \
        float(jnp.max(jnp.abs(out - ref_f32)))

    print("KERNEL_OK")
</pallas_src>

<mosaic_0001>
module attributes {stable_mosaic.version = 11 : i64} {
  func.func @_grn_kernel(%arg0: i32, %arg1: memref<16x48xbf16, #tpu.memory_space<vmem>>, %arg2: memref<48x128xbf16, #tpu.memory_space<vmem>>, %arg3: memref<128x128xbf16, #tpu.memory_space<vmem>>, %arg4: memref<128x256xbf16, #tpu.memory_space<vmem>>, %arg5: memref<2x128xf32, #tpu.memory_space<vmem>>, %arg6: memref<4x128xf32, #tpu.memory_space<vmem>>, %arg7: memref<16x128xf32, #tpu.memory_space<vmem>>) attributes {dimension_semantics = [#tpu.dimension_semantics<parallel>], iteration_bounds = array<i64: 1>, scalar_prefetch = 0 : i64, scratch_operands = 0 : i64, tpu.core_type = #tpu.core_type<tc>, window_params = [{transform_indices = @transform_0, window_bounds = array<i64: 16, 48>}, {pipeline_mode = #tpu.pipeline_mode<synchronous>, transform_indices = @transform_1, window_bounds = array<i64: 48, 128>}, {pipeline_mode = #tpu.pipeline_mode<synchronous>, transform_indices = @transform_2, window_bounds = array<i64: 128, 128>}, {pipeline_mode = #tpu.pipeline_mode<synchronous>, transform_indices = @transform_3, window_bounds = array<i64: 128, 256>}, {pipeline_mode = #tpu.pipeline_mode<synchronous>, transform_indices = @transform_4, window_bounds = array<i64: 2, 128>}, {pipeline_mode = #tpu.pipeline_mode<synchronous>, transform_indices = @transform_5, window_bounds = array<i64: 4, 128>}, {transform_indices = @transform_6, window_bounds = array<i64: 16, 128>}]} {
    %c0 = arith.constant 0 : index
    %c0_0 = arith.constant 0 : index
    %0 = vector.load %arg1[%c0, %c0_0] : memref<16x48xbf16, #tpu.memory_space<vmem>>, vector<16x48xbf16>
    %c0_1 = arith.constant 0 : index
    %c0_2 = arith.constant 0 : index
    %1 = vector.load %arg5[%c0_1, %c0_2] : memref<2x128xf32, #tpu.memory_space<vmem>>, vector<1x128xf32>
    %c1 = arith.constant 1 : index
    %c0_3 = arith.constant 0 : index
    %2 = vector.load %arg5[%c1, %c0_3] : memref<2x128xf32, #tpu.memory_space<vmem>>, vector<1x128xf32>
    %c0_4 = arith.constant 0 : index
    %c0_5 = arith.constant 0 : index
    %3 = vector.load %arg6[%c0_4, %c0_5] : memref<4x128xf32, #tpu.memory_space<vmem>>, vector<1x128xf32>
    %c1_6 = arith.constant 1 : index
    %c0_7 = arith.constant 0 : index
    %4 = vector.load %arg6[%c1_6, %c0_7] : memref<4x128xf32, #tpu.memory_space<vmem>>, vector<1x128xf32>
    %c2 = arith.constant 2 : index
    %c0_8 = arith.constant 0 : index
    %5 = vector.load %arg6[%c2, %c0_8] : memref<4x128xf32, #tpu.memory_space<vmem>>, vector<1x128xf32>
    %c3 = arith.constant 3 : index
    %c0_9 = arith.constant 0 : index
    %6 = vector.load %arg6[%c3, %c0_9] : memref<4x128xf32, #tpu.memory_space<vmem>>, vector<1x128xf32>
    %c0_10 = arith.constant 0 : index
    %c0_11 = arith.constant 0 : index
    %7 = vector.load %arg2[%c0_10, %c0_11] : memref<48x128xbf16, #tpu.memory_space<vmem>>, vector<48x128xbf16>
    %cst = arith.constant dense<0.000000e+00> : vector<16x128xf32>
    %8 = tpu.matmul %0, %7, %cst {dimension_numbers = #tpu.dot_dimension_numbers<[1], [0], [0], [1], [0, 0, 1, 1], [], []>} : vector<16x48xbf16>, vector<48x128xbf16>, vector<16x128xf32> -> vector<16x128xf32>
    %9 = vector.broadcast %1 : vector<1x128xf32> to vector<16x128xf32>
    %10 = arith.addf %8, %9 : vector<16x128xf32>
    %cst_12 = arith.constant 0.000000e+00 : f32
    %11 = vector.broadcast %cst_12 : f32 to vector<16x128xf32>
    %12 = arith.cmpf ogt, %10, %11 : vector<16x128xf32>
    %13 = math.exp %10 : vector<16x128xf32>
    %cst_13 = arith.constant 1.000000e+00 : f32
    %14 = vector.broadcast %cst_13 : f32 to vector<16x128xf32>
    %15 = arith.subf %13, %14 : vector<16x128xf32>
    %16 = arith.select %12, %10, %15 : vector<16x128xi1>, vector<16x128xf32>
    %17 = arith.truncf %16 : vector<16x128xf32> to vector<16x128xbf16>
    %c0_14 = arith.constant 0 : index
    %c0_15 = arith.constant 0 : index
    %18 = vector.load %arg3[%c0_14, %c0_15] : memref<128x128xbf16, #tpu.memory_space<vmem>>, vector<128x128xbf16>
    %cst_16 = arith.constant dense<0.000000e+00> : vector<16x128xf32>
    %19 = tpu.matmul %17, %18, %cst_16 {dimension_numbers = #tpu.dot_dimension_numbers<[1], [0], [0], [1], [0, 0, 1, 1], [], []>} : vector<16x128xbf16>, vector<128x128xbf16>, vector<16x128xf32> -> vector<16x128xf32>
    %20 = vector.broadcast %2 : vector<1x128xf32> to vector<16x128xf32>
    %21 = arith.addf %19, %20 : vector<16x128xf32>
    %22 = arith.truncf %21 : vector<16x128xf32> to vector<16x128xbf16>
    %c0_17 = arith.constant 0 : index
    %c0_18 = arith.constant 0 : index
    %23 = vector.load %arg4[%c0_17, %c0_18] : memref<128x256xbf16, #tpu.memory_space<vmem>>, vector<128x256xbf16>
    %cst_19 = arith.constant dense<0.000000e+00> : vector<16x256xf32>
    %24 = tpu.matmul %22, %23, %cst_19 {dimension_numbers = #tpu.dot_dimension_numbers<[1], [0], [0], [1], [0, 0, 1, 1], [], []>} : vector<16x128xbf16>, vector<128x256xbf16>, vector<16x256xf32> -> vector<16x256xf32>
    %25 = vector.extract_strided_slice %24 {offsets = [0, 0], sizes = [16, 128], strides = [1, 1]} : vector<16x256xf32> to vector<16x128xf32>
    %26 = vector.broadcast %3 : vector<1x128xf32> to vector<16x128xf32>
    %27 = arith.addf %25, %26 : vector<16x128xf32>
    %28 = vector.extract_strided_slice %24 {offsets = [0, 128], sizes = [16, 128], strides = [1, 1]} : vector<16x256xf32> to vector<16x128xf32>
    %29 = vector.broadcast %4 : vector<1x128xf32> to vector<16x128xf32>
    %30 = arith.addf %28, %29 : vector<16x128xf32>
    %31 = arith.negf %30 : vector<16x128xf32>
    %32 = math.exp %31 : vector<16x128xf32>
    %cst_20 = arith.constant 1.000000e+00 : f32
    %33 = vector.broadcast %cst_20 : f32 to vector<16x128xf32>
    %34 = arith.addf %33, %32 : vector<16x128xf32>
    %35 = arith.divf %33, %34 : vector<16x128xf32>
    %36 = arith.mulf %27, %35 : vector<16x128xf32>
    %37 = vector.extract_strided_slice %0 {offsets = [0, 0], sizes = [16, 32], strides = [1, 1]} : vector<16x48xbf16> to vector<16x32xbf16>
    %38 = arith.extf %37 : vector<16x32xbf16> to vector<16x32xf32>
    %c0_i32 = arith.constant 0 : i32
    %39 = arith.sitofp %c0_i32 : i32 to f32
    %40 = vector.broadcast %39 : f32 to vector<16x96xf32>
    %41 = tpu.concatenate %38, %40 in 1 : vector<16x32xf32>, vector<16x96xf32> -> vector<16x128xf32>
    %42 = arith.addf %36, %41 : vector<16x128xf32>
    %cst_21 = arith.constant dense<0.000000e+00> : vector<16xf32>
    %43 = vector.multi_reduction <add>, %42, %cst_21 [1] : vector<16x128xf32> to vector<16xf32>
    %44 = vector.shape_cast %43 : vector<16xf32> to vector<16x1xf32>
    %cst_22 = arith.constant 3.125000e-02 : f32
    %45 = vector.broadcast %cst_22 : f32 to vector<16x1xf32>
    %46 = arith.mulf %44, %45 : vector<16x1xf32>
    %47 = vector.broadcast %46 : vector<16x1xf32> to vector<16x128xf32>
    %48 = arith.subf %42, %47 : vector<16x128xf32>
    %49 = tpu.iota {dimensions = array<i32: 1>} : vector<16x128xi32>
    %c32_i32 = arith.constant 32 : i32
    %50 = vector.broadcast %c32_i32 : i32 to vector<16x128xi32>
    %51 = arith.cmpi slt, %49, %50 : vector<16x128xi32>
    %cst_23 = arith.constant 0.000000e+00 : f32
    %52 = vector.broadcast %cst_23 : f32 to vector<16x128xf32>
    %53 = arith.select %51, %48, %52 : vector<16x128xi1>, vector<16x128xf32>
    %54 = arith.mulf %53, %53 : vector<16x128xf32>
    %cst_24 = arith.constant dense<0.000000e+00> : vector<16xf32>
    %55 = vector.multi_reduction <add>, %54, %cst_24 [1] : vector<16x128xf32> to vector<16xf32>
    %56 = vector.shape_cast %55 : vector<16xf32> to vector<16x1xf32>
    %cst_25 = arith.constant 3.125000e-02 : f32
    %57 = vector.broadcast %cst_25 : f32 to vector<16x1xf32>
    %58 = arith.mulf %56, %57 : vector<16x1xf32>
    %cst_26 = arith.constant 9.99999974E-6 : f32
    %59 = vector.broadcast %cst_26 : f32 to vector<16x1xf32>
    %60 = arith.addf %58, %59 : vector<16x1xf32>
    %61 = math.rsqrt %60 : vector<16x1xf32>
    %62 = vector.broadcast %61 : vector<16x1xf32> to vector<16x128xf32>
    %63 = arith.mulf %53, %62 : vector<16x128xf32>
    %64 = vector.broadcast %5 : vector<1x128xf32> to vector<16x128xf32>
    %65 = arith.mulf %63, %64 : vector<16x128xf32>
    %66 = vector.broadcast %6 : vector<1x128xf32> to vector<16x128xf32>
    %67 = arith.addf %65, %66 : vector<16x128xf32>
    %c0_27 = arith.constant 0 : index
    %c0_28 = arith.constant 0 : index
    %68 = vector.load %arg7[%c0_27, %c0_28] : memref<16x128xf32, #tpu.memory_space<vmem>>, vector<16x128xf32>
    tpu.vector_store %arg7[%c0_27, %c0_28], %67 {strides = array<i32>} : memref<16x128xf32, #tpu.memory_space<vmem>>, vector<16x128xf32>,
    return
  }
  func.func @transform_0(%arg0: i32) -> (i32, i32) {
    %c0_i32 = arith.constant 0 : i32
    %c0_i32_0 = arith.constant 0 : i32
    return %arg0, %c0_i32 : i32, i32
  }
  func.func @transform_1(%arg0: i32) -> (i32, i32) {
    %c0_i32 = arith.constant 0 : i32
    %c0_i32_0 = arith.constant 0 : i32
    %c0_i32_1 = arith.constant 0 : i32
    return %c0_i32, %c0_i32_0 : i32, i32
  }
  func.func @transform_2(%arg0: i32) -> (i32, i32) {
    %c0_i32 = arith.constant 0 : i32
    %c0_i32_0 = arith.constant 0 : i32
    %c0_i32_1 = arith.constant 0 : i32
    return %c0_i32, %c0_i32_0 : i32, i32
  }
  func.func @transform_3(%arg0: i32) -> (i32, i32) {
    %c0_i32 = arith.constant 0 : i32
    %c0_i32_0 = arith.constant 0 : i32
    %c0_i32_1 = arith.constant 0 : i32
    return %c0_i32, %c0_i32_0 : i32, i32
  }
  func.func @transform_4(%arg0: i32) -> (i32, i32) {
    %c0_i32 = arith.constant 0 : i32
    %c0_i32_0 = arith.constant 0 : i32
    %c0_i32_1 = arith.constant 0 : i32
    return %c0_i32, %c0_i32_0 : i32, i32
  }
  func.func @transform_5(%arg0: i32) -> (i32, i32) {
    %c0_i32 = arith.constant 0 : i32
    %c0_i32_0 = arith.constant 0 : i32
    %c0_i32_1 = arith.constant 0 : i32
    return %c0_i32, %c0_i32_0 : i32, i32
  }
  func.func @transform_6(%arg0: i32) -> (i32, i32) {
    %c0_i32 = arith.constant 0 : i32
    %c0_i32_0 = arith.constant 0 : i32
    return %arg0, %c0_i32 : i32, i32
  }
}

module attributes {stable_mosaic.version = 11 : i64} {
  func.func @_grn_kernel(%arg0: i32, %arg1: memref<16x48xbf16, #tpu.memory_space<vmem>>, %arg2: memref<48x128xbf16, #tpu.memory_space<vmem>>, %arg3: memref<128x128xbf16, #tpu.memory_space<vmem>>, %arg4: memref<128x256xbf16, #tpu.memory_space<vmem>>, %arg5: memref<2x128xf32, #tpu.memory_space<vmem>>, %arg6: memref<4x128xf32, #tpu.memory_space<vmem>>, %arg7: memref<16x128xf32, #tpu.memory_space<vmem>>) attributes {dimension_semantics = [#tpu.dimension_semantics<parallel>], iteration_bounds = array<i64: 1>, scalar_prefetch = 0 : i64, scratch_operands = 0 : i64, tpu.core_type = #tpu.core_type<tc>, window_params = [{transform_indices = @transform_0, window_bounds = array<i64: 16, 48>}, {pipeline_mode = #tpu.pipeline_mode<synchronous>, transform_indices = @transform_1, window_bounds = array<i64: 48, 128>}, {pipeline_mode = #tpu.pipeline_mode<synchronous>, transform_indices = @transform_2, window_bounds = array<i64: 128, 128>}, {pipeline_mode = #tpu.pipeline_mode<synchronous>, transform_indices = @transform_3, window_bounds = array<i64: 128, 256>}, {pipeline_mode = #tpu.pipeline_mode<synchronous>, transform_indices = @transform_4, window_bounds = array<i64: 2, 128>}, {pipeline_mode = #tpu.pipeline_mode<synchronous>, transform_indices = @transform_5, window_bounds = array<i64: 4, 128>}, {transform_indices = @transform_6, window_bounds = array<i64: 16, 128>}]} {
    %c0 = arith.constant 0 : index
    %c0_0 = arith.constant 0 : index
    %0 = vector.load %arg1[%c0, %c0_0] : memref<16x48xbf16, #tpu.memory_space<vmem>>, vector<16x48xbf16>
    %c0_1 = arith.constant 0 : index
    %c0_2 = arith.constant 0 : index
    %1 = vector.load %arg5[%c0_1, %c0_2] : memref<2x128xf32, #tpu.memory_space<vmem>>, vector<1x128xf32>
    %c1 = arith.constant 1 : index
    %c0_3 = arith.constant 0 : index
    %2 = vector.load %arg5[%c1, %c0_3] : memref<2x128xf32, #tpu.memory_space<vmem>>, vector<1x128xf32>
    %c0_4 = arith.constant 0 : index
    %c0_5 = arith.constant 0 : index
    %3 = vector.load %arg6[%c0_4, %c0_5] : memref<4x128xf32, #tpu.memory_space<vmem>>, vector<1x128xf32>
    %c1_6 = arith.constant 1 : index
    %c0_7 = arith.constant 0 : index
    %4 = vector.load %arg6[%c1_6, %c0_7] : memref<4x128xf32, #tpu.memory_space<vmem>>, vector<1x128xf32>
    %c2 = arith.constant 2 : index
    %c0_8 = arith.constant 0 : index
    %5 = vector.load %arg6[%c2, %c0_8] : memref<4x128xf32, #tpu.memory_space<vmem>>, vector<1x128xf32>
    %c3 = arith.constant 3 : index
    %c0_9 = arith.constant 0 : index
    %6 = vector.load %arg6[%c3, %c0_9] : memref<4x128xf32, #tpu.memory_space<vmem>>, vector<1x128xf32>
    %c0_10 = arith.constant 0 : index
    %c0_11 = arith.constant 0 : index
    %7 = vector.load %arg2[%c0_10, %c0_11] : memref<48x128xbf16, #tpu.memory_space<vmem>>, vector<48x128xbf16>
    %cst = arith.constant dense<0.000000e+00> : vector<16x128xf32>
    %8 = tpu.matmul %0, %7, %cst {dimension_numbers = #tpu.dot_dimension_numbers<[1], [0], [0], [1], [0, 0, 1, 1], [], []>} : vector<16x48xbf16>, vector<48x128xbf16>, vector<16x128xf32> -> vector<16x128xf32>
    %9 = vector.broadcast %1 : vector<1x128xf32> to vector<16x128xf32>
    %10 = arith.addf %8, %9 : vector<16x128xf32>
    %cst_12 = arith.constant 0.000000e+00 : f32
    %11 = vector.broadcast %cst_12 : f32 to vector<16x128xf32>
    %12 = arith.cmpf ogt, %10, %11 : vector<16x128xf32>
    %13 = math.exp %10 : vector<16x128xf32>
    %cst_13 = arith.constant 1.000000e+00 : f32
    %14 = vector.broadcast %cst_13 : f32 to vector<16x128xf32>
    %15 = arith.subf %13, %14 : vector<16x128xf32>
    %16 = arith.select %12, %10, %15 : vector<16x128xi1>, vector<16x128xf32>
    %17 = arith.truncf %16 : vector<16x128xf32> to vector<16x128xbf16>
    %c0_14 = arith.constant 0 : index
    %c0_15 = arith.constant 0 : index
    %18 = vector.load %arg3[%c0_14, %c0_15] : memref<128x128xbf16, #tpu.memory_space<vmem>>, vector<128x128xbf16>
    %cst_16 = arith.constant dense<0.000000e+00> : vector<16x128xf32>
    %19 = tpu.matmul %17, %18, %cst_16 {dimension_numbers = #tpu.dot_dimension_numbers<[1], [0], [0], [1], [0, 0, 1, 1], [], []>} : vector<16x128xbf16>, vector<128x128xbf16>, vector<16x128xf32> -> vector<16x128xf32>
    %20 = vector.broadcast %2 : vector<1x128xf32> to vector<16x128xf32>
    %21 = arith.addf %19, %20 : vector<16x128xf32>
    %22 = arith.truncf %21 : vector<16x128xf32> to vector<16x128xbf16>
    %c0_17 = arith.constant 0 : index
    %c0_18 = arith.constant 0 : index
    %23 = vector.load %arg4[%c0_17, %c0_18] : memref<128x256xbf16, #tpu.memory_space<vmem>>, vector<128x256xbf16>
    %cst_19 = arith.constant dense<0.000000e+00> : vector<16x256xf32>
    %24 = tpu.matmul %22, %23, %cst_19 {dimension_numbers = #tpu.dot_dimension_numbers<[1], [0], [0], [1], [0, 0, 1, 1], [], []>} : vector<16x128xbf16>, vector<128x256xbf16>, vector<16x256xf32> -> vector<16x256xf32>
    %25 = vector.extract_strided_slice %24 {offsets = [0, 0], sizes = [16, 128], strides = [1, 1]} : vector<16x256xf32> to vector<16x128xf32>
    %26 = vector.broadcast %3 : vector<1x128xf32> to vector<16x128xf32>
    %27 = arith.addf %25, %26 : vector<16x128xf32>
    %28 = vector.extract_strided_slice %24 {offsets = [0, 128], sizes = [16, 128], strides = [1, 1]} : vector<16x256xf32> to vector<16x128xf32>
    %29 = vector.broadcast %4 : vector<1x128xf32> to vector<16x128xf32>
    %30 = arith.addf %28, %29 : vector<16x128xf32>
    %31 = arith.negf %30 : vector<16x128xf32>
    %32 = math.exp %31 : vector<16x128xf32>
    %cst_20 = arith.constant 1.000000e+00 : f32
    %33 = vector.broadcast %cst_20 : f32 to vector<16x128xf32>
    %34 = arith.addf %33, %32 : vector<16x128xf32>
    %35 = arith.divf %33, %34 : vector<16x128xf32>
    %36 = arith.mulf %27, %35 : vector<16x128xf32>
    %37 = vector.extract_strided_slice %0 {offsets = [0, 0], sizes = [16, 32], strides = [1, 1]} : vector<16x48xbf16> to vector<16x32xbf16>
    %38 = arith.extf %37 : vector<16x32xbf16> to vector<16x32xf32>
    %c0_i32 = arith.constant 0 : i32
    %39 = arith.sitofp %c0_i32 : i32 to f32
    %40 = vector.broadcast %39 : f32 to vector<16x96xf32>
    %41 = tpu.concatenate %38, %40 in 1 : vector<16x32xf32>, vector<16x96xf32> -> vector<16x128xf32>
    %42 = arith.addf %36, %41 : vector<16x128xf32>
    %cst_21 = arith.constant dense<0.000000e+00> : vector<16xf32>
    %43 = vector.multi_reduction <add>, %42, %cst_21 [1] : vector<16x128xf32> to vector<16xf32>
    %44 = vector.shape_cast %43 : vector<16xf32> to vector<16x1xf32>
    %cst_22 = arith.constant 3.125000e-02 : f32
    %45 = vector.broadcast %cst_22 : f32 to vector<16x1xf32>
    %46 = arith.mulf %44, %45 : vector<16x1xf32>
    %47 = vector.broadcast %46 : vector<16x1xf32> to vector<16x128xf32>
    %48 = arith.subf %42, %47 : vector<16x128xf32>
    %49 = tpu.iota {dimensions = array<i32: 1>} : vector<16x128xi32>
    %c32_i32 = arith.constant 32 : i32
    %50 = vector.broadcast %c32_i32 : i32 to vector<16x128xi32>
    %51 = arith.cmpi slt, %49, %50 : vector<16x128xi32>
    %cst_23 = arith.constant 0.000000e+00 : f32
    %52 = vector.broadcast %cst_23 : f32 to vector<16x128xf32>
    %53 = arith.select %51, %48, %52 : vector<16x128xi1>, vector<16x128xf32>
    %54 = arith.mulf %53, %53 : vector<16x128xf32>
    %cst_24 = arith.constant dense<0.000000e+00> : vector<16xf32>
    %55 = vector.multi_reduction <add>, %54, %cst_24 [1] : vector<16x128xf32> to vector<16xf32>
    %56 = vector.shape_cast %55 : vector<16xf32> to vector<16x1xf32>
    %cst_25 = arith.constant 3.125000e-02 : f32
    %57 = vector.broadcast %cst_25 : f32 to vector<16x1xf32>
    %58 = arith.mulf %56, %57 : vector<16x1xf32>
    %cst_26 = arith.constant 9.99999974E-6 : f32
    %59 = vector.broadcast %cst_26 : f32 to vector<16x1xf32>
    %60 = arith.addf %58, %59 : vector<16x1xf32>
    %61 = math.rsqrt %60 : vector<16x1xf32>
    %62 = vector.broadcast %61 : vector<16x1xf32> to vector<16x128xf32>
    %63 = arith.mulf %53, %62 : vector<16x128xf32>
    %64 = vector.broadcast %5 : vector<1x128xf32> to vector<16x128xf32>
    %65 = arith.mulf %63, %64 : vector<16x128xf32>
    %66 = vector.broadcast %6 : vector<1x128xf32> to vector<16x128xf32>
    %67 = arith.addf %65, %66 : vector<16x128xf32>
    %c0_27 = arith.constant 0 : index
    %c0_28 = arith.constant 0 : index
    %68 = vector.load %arg7[%c0_27, %c0_28] : memref<16x128xf32, #tpu.memory_space<vmem>>, vector<16x128xf32>
    tpu.vector_store %arg7[%c0_27, %c0_28], %67 {strides = array<i32>} : memref<16x128xf32, #tpu.memory_space<vmem>>, vector<16x128xf32>,
    return
  }
  func.func @transform_0(%arg0: i32) -> (i32, i32) {
    %c0_i32 = arith.constant 0 : i32
    %c0_i32_0 = arith.constant 0 : i32
    return %arg0, %c0_i32 : i32, i32
  }
  func.func @transform_1(%arg0: i32) -> (i32, i32) {
    %c0_i32 = arith.constant 0 : i32
    %c0_i32_0 = arith.constant 0 : i32
    %c0_i32_1 = arith.constant 0 : i32
    return %c0_i32, %c0_i32_0 : i32, i32
  }
  func.func @transform_2(%arg0: i32) -> (i32, i32) {
    %c0_i32 = arith.constant 0 : i32
    %c0_i32_0 = arith.constant 0 : i32
    %c0_i32_1 = arith.constant 0 : i32
    return %c0_i32, %c0_i32_0 : i32, i32
  }
  func.func @transform_3(%arg0: i32) -> (i32, i32) {
    %c0_i32 = arith.constant 0 : i32
    %c0_i32_0 = arith.constant 0 : i32
    %c0_i32_1 = arith.constant 0 : i32
    return %c0_i32, %c0_i32_0 : i32, i32
  }
  func.func @transform_4(%arg0: i32) -> (i32, i32) {
    %c0_i32 = arith.constant 0 : i32
    %c0_i32_0 = arith.constant 0 : i32
    %c0_i32_1 = arith.constant 0 : i32
    return %c0_i32, %c0_i32_0 : i32, i32
  }
  func.func @transform_5(%arg0: i32) -> (i32, i32) {
    %c0_i32 = arith.constant 0 : i32
    %c0_i32_0 = arith.constant 0 : i32
    %c0_i32_1 = arith.constant 0 : i32
    return %c0_i32, %c0_i32_0 : i32, i32
  }
  func.func @transform_6(%arg0: i32) -> (i32, i32) {
    %c0_i32 = arith.constant 0 : i32
    %c0_i32_0 = arith.constant 0 : i32
    return %arg0, %c0_i32 : i32, i32
  }
}

</mosaic_0001>

<llo_original>
// kernel: grn_forward.1
$region0: #{grn_forward.1}
  #allocation0 [shape = 'u32[]', space=smem, size = 0x4, offset = 0x4, fixed_abs, tag = 'smem constant byte address 0x4 - core index']
  #allocation1 [shape = 'u32[144,128]{1,0:T(1,128)}', space=vmem, size = 0x12000, scoped, tag = 'internal scratch']
  %s0 = inlined_call_operand.vmem [shape: bf16[16,48], index: 0, kind: input, shape index: {}]
  %s1 = inlined_call_operand.vmem [shape: bf16[48,128], index: 1, kind: input, shape index: {}]
  %s2 = inlined_call_operand.vmem [shape: bf16[128,128], index: 2, kind: input, shape index: {}]
  %s3 = inlined_call_operand.vmem [shape: bf16[128,256], index: 3, kind: input, shape index: {}]
  %s4 = inlined_call_operand.vmem [shape: f32[2,128], index: 4, kind: input, shape index: {}]
  %s5 = inlined_call_operand.vmem [shape: f32[4,128], index: 5, kind: input, shape index: {}]
  %s6 = inlined_call_operand.vmem [shape: f32[16,128], index: 6, kind: output, shape index: {}]
  %s7 = sld [smem:[#allocation0]]
  $region34: #{grn_forward.1} parent=0
    _
  %s9 = ssub.s32 1, %s7
  %s10 = scalar_select 0, %s9, %s7
  // Predicated region
  $region2: #{grn_forward.1} parent=0 // pred_check
    _
  $region3: #{grn_forward.1} parent=0 // pred_check_branch
    %12 = sbr.rel (0) target = $region5
  $region4: #{grn_forward.1} parent=0 // pred_region
    _
  $region5: #{grn_forward.1} parent=0 // pred_fallthru
    _
  // Predicated region
  $region6: #{grn_forward.1} parent=0 // pred_check
    _
  $region7: #{grn_forward.1} parent=0 // pred_check_branch
    %14 = sbr.rel (0) target = $region9
  $region8: #{grn_forward.1} parent=0 // pred_region
    _
  $region9: #{grn_forward.1} parent=0 // pred_fallthru
    _
  // Predicated region
  $region10: #{grn_forward.1} parent=0 // pred_check
    _
  $region11: #{grn_forward.1} parent=0 // pred_check_branch
    %16 = sbr.rel (0) target = $region13
  $region12: #{grn_forward.1} parent=0 // pred_region
    _
  $region13: #{grn_forward.1} parent=0 // pred_fallthru
    _
  // Predicated region
  $region14: #{grn_forward.1} parent=0 // pred_check
    _
  $region15: #{grn_forward.1} parent=0 // pred_check_branch
    %18 = sbr.rel (0) target = $region17
  $region16: #{grn_forward.1} parent=0 // pred_region
    _
  $region17: #{grn_forward.1} parent=0 // pred_fallthru
    _
  // Predicated region
  $region18: #{grn_forward.1} parent=0 // pred_check
    _
  $region19: #{grn_forward.1} parent=0 // pred_check_branch
    %20 = sbr.rel (0) target = $region21
  $region20: #{grn_forward.1} parent=0 // pred_region
    _
  $region21: #{grn_forward.1} parent=0 // pred_fallthru
    _
  // Predicated region
  $region22: #{grn_forward.1} parent=0 // pred_check
    _
  $region23: #{grn_forward.1} parent=0 // pred_check_branch
    %22 = sbr.rel (0) target = $region25
  $region24: #{grn_forward.1} parent=0 // pred_region
    _
  $region25: #{grn_forward.1} parent=0 // pred_fallthru
    _
  %v24 = vld [vmem:[%s0] sm:$0xf]
  %v25 = vld [vmem:[%s0 + $0x4] sm:$0xf]
  %v26 = vld [vmem:[%s4] sm:$0x1]
  %v27 = vld [vmem:[%s4 + $0x1] sm:$0x1]
  %v28 = vld [vmem:[%s5] sm:$0x1]
  %v29 = vld [vmem:[%s5 + $0x1] sm:$0x1]
  %v30 = vld [vmem:[%s5 + $0x2] sm:$0x1]
  %v31 = vld [vmem:[%s5 + $0x3] sm:$0x1]
  %v32 = vld [vmem:[%s1] sm:$0xf]
  %v33 = vld [vmem:[%s1 + $0x4] sm:$0xf]
  %v34 = vld [vmem:[%s1 + $0x8] sm:$0xf]
  %v35 = vld [vmem:[%s1 + $0xc] sm:$0xf]
  %v36 = vld [vmem:[%s1 + $0x10] sm:$0xf]
  %v37 = vld [vmem:[%s1 + $0x14] sm:$0xf]
  %v38 = vlaneseq
  %v39 = vshrl.u32 %v38, 7
  %v40 = vsub.s32 0, %v39
  %v41 = vrot.slane %v26, %v40
  %v44 = vunpack.c.l.b16 %v24
  %v45 = vunpack.c.l.b16 %v25
  %v46 = vpack.c.b16 %v45, %v44
  %v53 = vunpack.c.l.b16 %v32
  %v54 = vunpack.c.l.b16 %v33
  %v55 = vunpack.c.l.b16 %v34
  %v56 = vunpack.c.l.b16 %v35
  %v57 = vunpack.c.l.b16 %v36
  %v58 = vunpack.c.l.b16 %v37
  %v59 = vpack.c.b16 %v54, %v53
  %v60 = vpack.c.b16 %v56, %v55
  %v61 = vpack.c.b16 %v58, %v57
  %vm65 = vcmask 392192
  %v67 = vsel %vm65, %v46, 0
  %69 = vmatprep.subr.bf16.mxu0 0
  %70 = vmatpush1.bf16.msra.mxu0 0
  %71 = vmatprep.subr.bf16.mxu0 0
  %72 = vmatpush1.bf16.msra.mxu0 0
  %73 = vmatprep.subr.bf16.mxu0 0
  %74 = vmatpush1.bf16.msra.mxu0 0
  %75 = vmatprep.subr.bf16.mxu0 0
  %76 = vmatpush1.bf16.msra.mxu0 0
  %77 = vmatprep.subr.bf16.mxu0 0
  %78 = vmatpush1.bf16.msra.mxu0 0
  %79 = vmatprep.subr.bf16.mxu0 0
  %80 = vmatpush1.bf16.msra.mxu0 %v61
  %81 = vmatprep.subr.bf16.mxu0 0
  %82 = vmatpush1.bf16.msra.mxu0 %v60
  %83 = vmatprep.subr.bf16.mxu0 0
  %84 = vmatpush1.bf16.msra.mxu0 %v59
  %85 = vmatprep.subr.bf16.mxu0 0
  %86 = vmatpush2.bf16.msra.mxu0 0
  %87 = vmatprep.subr.bf16.mxu0 0
  %88 = vmatpush2.bf16.msra.mxu0 0
  %89 = vmatprep.subr.bf16.mxu0 0
  %90 = vmatpush2.bf16.msra.mxu0 0
  %91 = vmatprep.subr.bf16.mxu0 0
  %92 = vmatpush2.bf16.msra.mxu0 0
  %93 = vmatprep.subr.bf16.mxu0 0
  %94 = vmatpush2.bf16.msra.mxu0 0
  %95 = vmatprep.subr.bf16.mxu0 0
  %96 = vmatpush2.bf16.msra.mxu0 0
  %97 = vmatprep.subr.bf16.mxu0 0
  %98 = vmatpush2.bf16.msra.mxu0 0
  %99 = vmatprep.subr.bf16.mxu0 0
  %100 = vmatpush2.bf16.msra.mxu0 0
  %101 = vmatprep.mubr.bf16.mxu0 0
  %102 = vmatmul.mubr.bf16.gmra.mxu0 %v67
  %v103 = vpop.f32.mrf.mxu0
  %v104 = vadd.f32 %v41, %v103
  %v105 = vpop.f32.mrf.mxu0
  %v106 = vpop.f32.mrf.mxu0
  %v107 = vadd.f32 %v41, %v106
  %v108 = vpop.f32.mrf.mxu0
  %109 = vdwg.mxu0
  %vm110 = vcmp.gt.f32.partialorder %v104, 0.0
  %vm111 = vcmp.gt.f32.partialorder %v107, 0.0
  %v112 = vmul.f32 %v104, 1.442695
  %v113 = vpow.pop %v112
  %v114 = vmul.f32 %v107, 1.442695
  %v115 = vpow.pop %v114
  %v116 = vsub.f32 %v113, 1.0
  %v117 = vsub.f32 %v115, 1.0
  %v118 = vsel %vm110, %v104, %v116
  %v119 = vsel %vm111, %v107, %v117
  %v120 = vpack.c.bf16 %v119, %v118
  %v121 = vld [vmem:[%s2] sm:$0xf]
  %v122 = vld [vmem:[%s2 + $0x4] sm:$0xf]
  %v123 = vld [vmem:[%s2 + $0x8] sm:$0xf]
  %v124 = vld [vmem:[%s2 + $0xc] sm:$0xf]
  %v125 = vld [vmem:[%s2 + $0x10] sm:$0xf]
  %v126 = vld [vmem:[%s2 + $0x14] sm:$0xf]
  %v127 = vld [vmem:[%s2 + $0x18] sm:$0xf]
  %v128 = vld [vmem:[%s2 + $0x1c] sm:$0xf]
  %v129 = vld [vmem:[%s2 + $0x20] sm:$0xf]
  %v130 = vld [vmem:[%s2 + $0x24] sm:$0xf]
  %v131 = vld [vmem:[%s2 + $0x28] sm:$0xf]
  %v132 = vld [vmem:[%s2 + $0x2c] sm:$0xf]
  %v133 = vld [vmem:[%s2 + $0x30] sm:$0xf]
  %v134 = vld [vmem:[%s2 + $0x34] sm:$0xf]
  %v135 = vld [vmem:[%s2 + $0x38] sm:$0xf]
  %v136 = vld [vmem:[%s2 + $0x3c] sm:$0xf]
  %v137 = vlaneseq
  %v138 = vshrl.u32 %v137, 7
  %v139 = vsub.s32 0, %v138
  %v140 = vrot.slane %v27, %v139
  %v157 = vunpack.c.l.b16 %v121
  %v158 = vunpack.c.l.b16 %v122
  %v159 = vunpack.c.l.b16 %v123
  %v160 = vunpack.c.l.b16 %v124
  %v161 = vunpack.c.l.b16 %v125
  %v162 = vunpack.c.l.b16 %v126
  %v163 = vunpack.c.l.b16 %v127
  %v164 = vunpack.c.l.b16 %v128
  %v165 = vunpack.c.l.b16 %v129
  %v166 = vunpack.c.l.b16 %v130
  %v167 = vunpack.c.l.b16 %v131
  %v168 = vunpack.c.l.b16 %v132
  %v169 = vunpack.c.l.b16 %v133
  %v170 = vunpack.c.l.b16 %v134
  %v171 = vunpack.c.l.b16 %v135
  %v172 = vunpack.c.l.b16 %v136
  %v173 = vpack.c.b16 %v158, %v157
  %v174 = vpack.c.b16 %v160, %v159
  %v175 = vpack.c.b16 %v162, %v161
  %v176 = vpack.c.b16 %v164, %v163
  %v177 = vpack.c.b16 %v166, %v165
  %v178 = vpack.c.b16 %v168, %v167
  %v179 = vpack.c.b16 %v170, %v169
  %v180 = vpack.c.b16 %v172, %v171
  %189 = vmatprep.subr.bf16.mxu0 0
  %190 = vmatpush1.bf16.msra.mxu0 %v180
  %191 = vmatprep.subr.bf16.mxu0 0
  %192 = vmatpush1.bf16.msra.mxu0 %v179
  %193 = vmatprep.subr.bf16.mxu0 0
  %194 = vmatpush1.bf16.msra.mxu0 %v178
  %195 = vmatprep.subr.bf16.mxu0 0
  %196 = vmatpush1.bf16.msra.mxu0 %v177
  %197 = vmatprep.subr.bf16.mxu0 0
  %198 = vmatpush1.bf16.msra.mxu0 %v176
  %199 = vmatprep.subr.bf16.mxu0 0
  %200 = vmatpush1.bf16.msra.mxu0 %v175
  %201 = vmatprep.subr.bf16.mxu0 0
  %202 = vmatpush1.bf16.msra.mxu0 %v174
  %203 = vmatprep.subr.bf16.mxu0 0
  %204 = vmatpush1.bf16.msra.mxu0 %v173
  %205 = vmatprep.subr.bf16.mxu0 0
  %206 = vmatpush2.bf16.msra.mxu0 0
  %207 = vmatprep.subr.bf16.mxu0 0
  %208 = vmatpush2.bf16.msra.mxu0 0
  %209 = vmatprep.subr.bf16.mxu0 0
  %210 = vmatpush2.bf16.msra.mxu0 0
  %211 = vmatprep.subr.bf16.mxu0 0
  %212 = vmatpush2.bf16.msra.mxu0 0
  %213 = vmatprep.subr.bf16.mxu0 0
  %214 = vmatpush2.bf16.msra.mxu0 0
  %215 = vmatprep.subr.bf16.mxu0 0
  %216 = vmatpush2.bf16.msra.mxu0 0
  %217 = vmatprep.subr.bf16.mxu0 0
  %218 = vmatpush2.bf16.msra.mxu0 0
  %219 = vmatprep.subr.bf16.mxu0 0
  %220 = vmatpush2.bf16.msra.mxu0 0
  %221 = vmatprep.mubr.bf16.mxu0 0
  %222 = vmatmul.mubr.bf16.gmra.mxu0 %v120
  %v223 = vpop.f32.mrf.mxu0
  %v224 = vadd.f32 %v140, %v223
  %v225 = vpop.f32.mrf.mxu0
  %v226 = vpop.f32.mrf.mxu0
  %v227 = vadd.f32 %v140, %v226
  %v228 = vpop.f32.mrf.mxu0
  %229 = vdwg.mxu0
  %v230 = vpack.c.bf16 %v227, %v224
  %v231 = vld [vmem:[%s3] sm:$0xff]
  %v232 = vld [vmem:[%s3 + $0x8] sm:$0xff]
  %v233 = vld [vmem:[%s3 + $0x10] sm:$0xff]
  %v234 = vld [vmem:[%s3 + $0x18] sm:$0xff]
  %v235 = vld [vmem:[%s3 + $0x20] sm:$0xff]
  %v236 = vld [vmem:[%s3 + $0x28] sm:$0xff]
  %v237 = vld [vmem:[%s3 + $0x30] sm:$0xff]
  %v238 = vld [vmem:[%s3 + $0x38] sm:$0xff]
  %v239 = vld [vmem:[%s3 + $0x40] sm:$0xff]
  %v240 = vld [vmem:[%s3 + $0x48] sm:$0xff]
  %v241 = vld [vmem:[%s3 + $0x50] sm:$0xff]
  %v242 = vld [vmem:[%s3 + $0x58] sm:$0xff]
  %v243 = vld [vmem:[%s3 + $0x60] sm:$0xff]
  %v244 = vld [vmem:[%s3 + $0x68] sm:$0xff]
  %v245 = vld [vmem:[%s3 + $0x70] sm:$0xff]
  %v246 = vld [vmem:[%s3 + $0x78] sm:$0xff]
  %v263 = vunpack.c.l.b16 %v231
  %v264 = vunpack.c.h.b16 %v231
  %v265 = vunpack.c.l.b16 %v232
  %v266 = vunpack.c.h.b16 %v232
  %v267 = vunpack.c.l.b16 %v233
  %v268 = vunpack.c.h.b16 %v233
  %v269 = vunpack.c.l.b16 %v234
  %v270 = vunpack.c.h.b16 %v234
  %v271 = vunpack.c.l.b16 %v235
  %v272 = vunpack.c.h.b16 %v235
  %v273 = vunpack.c.l.b16 %v236
  %v274 = vunpack.c.h.b16 %v236
  %v275 = vunpack.c.l.b16 %v237
  %v276 = vunpack.c.h.b16 %v237
  %v277 = vunpack.c.l.b16 %v238
  %v278 = vunpack.c.h.b16 %v238
  %v279 = vunpack.c.l.b16 %v239
  %v280 = vunpack.c.h.b16 %v239
  %v281 = vunpack.c.l.b16 %v240
  %v282 = vunpack.c.h.b16 %v240
  %v283 = vunpack.c.l.b16 %v241
  %v284 = vunpack.c.h.b16 %v241
  %v285 = vunpack.c.l.b16 %v242
  %v286 = vunpack.c.h.b16 %v242
  %v287 = vunpack.c.l.b16 %v243
  %v288 = vunpack.c.h.b16 %v243
  %v289 = vunpack.c.l.b16 %v244
  %v290 = vunpack.c.h.b16 %v244
  %v291 = vunpack.c.l.b16 %v245
  %v292 = vunpack.c.h.b16 %v245
  %v293 = vunpack.c.l.b16 %v246
  %v294 = vunpack.c.h.b16 %v246
  %v295 = vpack.c.b16 %v265, %v263
  %v296 = vpack.c.b16 %v266, %v264
  %v297 = vpack.c.b16 %v269, %v267
  %v298 = vpack.c.b16 %v270, %v268
  %v299 = vpack.c.b16 %v273, %v271
  %v300 = vpack.c.b16 %v274, %v272
  %v301 = vpack.c.b16 %v277, %v275
  %v302 = vpack.c.b16 %v278, %v276
  %v303 = vpack.c.b16 %v281, %v279
  %v304 = vpack.c.b16 %v282, %v280
  %v305 = vpack.c.b16 %v285, %v283
  %v306 = vpack.c.b16 %v286, %v284
  %v307 = vpack.c.b16 %v289, %v287
  %v308 = vpack.c.b16 %v290, %v288
  %v309 = vpack.c.b16 %v293, %v291
  %v310 = vpack.c.b16 %v294, %v292
  %327 = vmatprep.subr.bf16.mxu0 %v310
  %328 = vmatpush1.bf16.msra.mxu0 %v309
  %329 = vmatprep.subr.bf16.mxu0 %v308
  %330 = vmatpush1.bf16.msra.mxu0 %v307
  %331 = vmatprep.subr.bf16.mxu0 %v306
  %332 = vmatpush1.bf16.msra.mxu0 %v305
  %333 = vmatprep.subr.bf16.mxu0 %v304
  %334 = vmatpush1.bf16.msra.mxu0 %v303
  %335 = vmatprep.subr.bf16.mxu0 %v302
  %336 = vmatpush1.bf16.msra.mxu0 %v301
  %337 = vmatprep.subr.bf16.mxu0 %v300
  %338 = vmatpush1.bf16.msra.mxu0 %v299
  %339 = vmatprep.subr.bf16.mxu0 %v298
  %340 = vmatpush1.bf16.msra.mxu0 %v297
  %341 = vmatprep.subr.bf16.mxu0 %v296
  %342 = vmatpush1.bf16.msra.mxu0 %v295
  %343 = vmatprep.subr.bf16.mxu0 0
  %344 = vmatpush2.bf16.msra.mxu0 0
  %345 = vmatprep.subr.bf16.mxu0 0
  %346 = vmatpush2.bf16.msra.mxu0 0
  %347 = vmatprep.subr.bf16.mxu0 0
  %348 = vmatpush2.bf16.msra.mxu0 0
  %349 = vmatprep.subr.bf16.mxu0 0
  %350 = vmatpush2.bf16.msra.mxu0 0
  %351 = vmatprep.subr.bf16.mxu0 0
  %352 = vmatpush2.bf16.msra.mxu0 0
  %353 = vmatprep.subr.bf16.mxu0 0
  %354 = vmatpush2.bf16.msra.mxu0 0
  %355 = vmatprep.subr.bf16.mxu0 0
  %356 = vmatpush2.bf16.msra.mxu0 0
  %357 = vmatprep.subr.bf16.mxu0 0
  %358 = vmatpush2.bf16.msra.mxu0 0
  %359 = vmatprep.mubr.bf16.mxu0 0
  %360 = vmatmul.mubr.bf16.gmra.mxu0 %v230
  %v361 = vpop.f32.mrf.mxu0
  %v362 = vadd.f32 0.0, %v361
  %v363 = vpop.f32.mrf.mxu0
  %v364 = vadd.f32 0.0, %v363
  %v365 = vpop.f32.mrf.mxu0
  %v366 = vadd.f32 0.0, %v365
  %v367 = vpop.f32.mrf.mxu0
  %v368 = vadd.f32 0.0, %v367
  %369 = vdwg.mxu0
  %v370 = vlaneseq
  %v371 = vshrl.u32 %v370, 7
  %v372 = vsub.s32 0, %v371
  %v373 = vrot.slane %v28, %v372
  %v374 = vadd.f32 %v362, %v373
  %v375 = vadd.f32 %v366, %v373
  %v376 = vlaneseq
  %v377 = vshrl.u32 %v376, 7
  %v378 = vsub.s32 0, %v377
  %v379 = vrot.slane %v29, %v378
  %v380 = vadd.f32 %v364, %v379
  %v381 = vadd.f32 %v368, %v379
  %v382 = vxor.u32 %v380, 2147483648
  %v383 = vxor.u32 %v381, 2147483648
  %v384 = vmul.f32 %v382, 1.442695
  %v385 = vpow.pop %v384
  %v386 = vmul.f32 %v383, 1.442695
  %v387 = vpow.pop %v386
  %v388 = vadd.f32 %v385, 1.0
  %v389 = vadd.f32 %v387, 1.0
  %v390 = vrcp.pop %v388
  %v391 = vmul.f32 1.0, %v390
  %v392 = vrcp.pop %v389
  %v393 = vmul.f32 1.0, %v392
  %v394 = vmul.f32 %v374, %v391
  %v395 = vmul.f32 %v375, %v393
  %v396 = vunpack.c.l.bf16 %v24
  %v397 = vunpack.c.l.bf16 %v25
  %vm398 = vcmask 261120
  %v399 = vsel %vm398, %v396, 0.0
  %v400 = vsel %vm398, %v397, 0.0
  %v401 = vadd.f32 %v394, %v399
  %v402 = vadd.f32 %v395, %v400
  %403 = vadd.xlane.f32.xlu0 %v401
  %v404 = vpop.xlane.xlu0 %403
  %405 = vadd.xlane.f32.xlu0 %v402
  %v406 = vpop.xlane.xlu0 %405
  %v407 = vmul.f32 %v404, 0.03125
  %v408 = vmul.f32 %v406, 0.03125
  %v409 = vsub.f32 %v401, %v407
  %v410 = vsub.f32 %v402, %v408
  %v411 = vlaneseq
  %v412 = vand.u32 %v411, 127
  %vm413 = vcmp.lt.s32.totalorder %v412, 32
  %v414 = vsel %vm413, %v409, 0.0
  %v415 = vsel %vm413, %v410, 0.0
  %v416 = vmul.f32 %v414, %v414
  %v417 = vmul.f32 %v415, %v415
  %418 = vadd.xlane.f32.xlu0 %v416
  %v419 = vpop.xlane.xlu0 %418
  %420 = vadd.xlane.f32.xlu0 %v417
  %v421 = vpop.xlane.xlu0 %420
  %v422 = vmul.f32 %v419, 0.03125
  %v423 = vmul.f32 %v421, 0.03125
  %v424 = vadd.f32 %v422, 1e-05
  %v425 = vadd.f32 %v423, 1e-05
  %v426 = vrsqrt.pop %v424
  %v427 = vrsqrt.pop %v425
  %v428 = vmul.f32 %v414, %v426
  %v429 = vmul.f32 %v415, %v427
  %v430 = vlaneseq
  %v431 = vshrl.u32 %v430, 7
  %v432 = vsub.s32 0, %v431
  %v433 = vrot.slane %v30, %v432
  %v434 = vmul.f32 %v428, %v433
  %v435 = vmul.f32 %v429, %v433
  %v436 = vlaneseq
  %v437 = vshrl.u32 %v436, 7
  %v438 = vsub.s32 0, %v437
  %v439 = vrot.slane %v31, %v438
  %v440 = vadd.f32 %v434, %v439
  %v441 = vadd.f32 %v435, %v439
  %442 = vst [vmem:[%s6] sm:$0xff] %v440
  %443 = vst [vmem:[%s6 + $0x8] sm:$0xff] %v441
  // Predicated region
  $region26: #{grn_forward.1} parent=0 // pred_check
    _
  $region27: #{grn_forward.1} parent=0 // pred_check_branch
    %445 = sbr.rel (0) target = $region29
  $region28: #{grn_forward.1} parent=0 // pred_region
    _
  $region29: #{grn_forward.1} parent=0 // pred_fallthru
    _
  // Predicated region
  $region30: #{grn_forward.1} parent=0 // pred_check
    _
  $region31: #{grn_forward.1} parent=0 // pred_check_branch
    %447 = sbr.rel (0) target = $region33
  $region32: #{grn_forward.1} parent=0 // pred_region
    _
  $region33: #{grn_forward.1} parent=0 // pred_fallthru
    _

// kernel: grn_forward.1
$region0: #{grn_forward.1}
  #allocation0 [shape = 'u32[]', space=smem, size = 0x4, offset = 0x4, fixed_abs, tag = 'smem constant byte address 0x4 - core index']
  #allocation1 [shape = 'u32[144,128]{1,0:T(1,128)}', space=vmem, size = 0x12000, scoped, tag = 'internal scratch']
  %s0 = inlined_call_operand.vmem [shape: bf16[16,48], index: 0, kind: input, shape index: {}]
  %s1 = inlined_call_operand.vmem [shape: bf16[48,128], index: 1, kind: input, shape index: {}]
  %s2 = inlined_call_operand.vmem [shape: bf16[128,128], index: 2, kind: input, shape index: {}]
  %s3 = inlined_call_operand.vmem [shape: bf16[128,256], index: 3, kind: input, shape index: {}]
  %s4 = inlined_call_operand.vmem [shape: f32[2,128], index: 4, kind: input, shape index: {}]
  %s5 = inlined_call_operand.vmem [shape: f32[4,128], index: 5, kind: input, shape index: {}]
  %s6 = inlined_call_operand.vmem [shape: f32[16,128], index: 6, kind: output, shape index: {}]
  %s7 = sld [smem:[#allocation0]]
  $region34: #{grn_forward.1} parent=0
    _
  %s9 = ssub.s32 1, %s7
  %s10 = scalar_select 0, %s9, %s7
  // Predicated region
  $region2: #{grn_forward.1} parent=0 // pred_check
    _
  $region3: #{grn_forward.1} parent=0 // pred_check_branch
    %12 = sbr.rel (0) target = $region5
  $region4: #{grn_forward.1} parent=0 // pred_region
    _
  $region5: #{grn_forward.1} parent=0 // pred_fallthru
    _
  // Predicated region
  $region6: #{grn_forward.1} parent=0 // pred_check
    _
  $region7: #{grn_forward.1} parent=0 // pred_check_branch
    %14 = sbr.rel (0) target = $region9
  $region8: #{grn_forward.1} parent=0 // pred_region
    _
  $region9: #{grn_forward.1} parent=0 // pred_fallthru
    _
  // Predicated region
  $region10: #{grn_forward.1} parent=0 // pred_check
    _
  $region11: #{grn_forward.1} parent=0 // pred_check_branch
    %16 = sbr.rel (0) target = $region13
  $region12: #{grn_forward.1} parent=0 // pred_region
    _
  $region13: #{grn_forward.1} parent=0 // pred_fallthru
    _
  // Predicated region
  $region14: #{grn_forward.1} parent=0 // pred_check
    _
  $region15: #{grn_forward.1} parent=0 // pred_check_branch
    %18 = sbr.rel (0) target = $region17
  $region16: #{grn_forward.1} parent=0 // pred_region
    _
  $region17: #{grn_forward.1} parent=0 // pred_fallthru
    _
  // Predicated region
  $region18: #{grn_forward.1} parent=0 // pred_check
    _
  $region19: #{grn_forward.1} parent=0 // pred_check_branch
    %20 = sbr.rel (0) target = $region21
  $region20: #{grn_forward.1} parent=0 // pred_region
    _
  $region21: #{grn_forward.1} parent=0 // pred_fallthru
    _
  // Predicated region
  $region22: #{grn_forward.1} parent=0 // pred_check
    _
  $region23: #{grn_forward.1} parent=0 // pred_check_branch
    %22 = sbr.rel (0) target = $region25
  $region24: #{grn_forward.1} parent=0 // pred_region
    _
  $region25: #{grn_forward.1} parent=0 // pred_fallthru
    _
  %v24 = vld [vmem:[%s0] sm:$0xf]
  %v25 = vld [vmem:[%s0 + $0x4] sm:$0xf]
  %v26 = vld [vmem:[%s4] sm:$0x1]
  %v27 = vld [vmem:[%s4 + $0x1] sm:$0x1]
  %v28 = vld [vmem:[%s5] sm:$0x1]
  %v29 = vld [vmem:[%s5 + $0x1] sm:$0x1]
  %v30 = vld [vmem:[%s5 + $0x2] sm:$0x1]
  %v31 = vld [vmem:[%s5 + $0x3] sm:$0x1]
  %v32 = vld [vmem:[%s1] sm:$0xf]
  %v33 = vld [vmem:[%s1 + $0x4] sm:$0xf]
  %v34 = vld [vmem:[%s1 + $0x8] sm:$0xf]
  %v35 = vld [vmem:[%s1 + $0xc] sm:$0xf]
  %v36 = vld [vmem:[%s1 + $0x10] sm:$0xf]
  %v37 = vld [vmem:[%s1 + $0x14] sm:$0xf]
  %v38 = vlaneseq
  %v39 = vshrl.u32 %v38, 7
  %v40 = vsub.s32 0, %v39
  %v41 = vrot.slane %v26, %v40
  %v44 = vunpack.c.l.b16 %v24
  %v45 = vunpack.c.l.b16 %v25
  %v46 = vpack.c.b16 %v45, %v44
  %v53 = vunpack.c.l.b16 %v32
  %v54 = vunpack.c.l.b16 %v33
  %v55 = vunpack.c.l.b16 %v34
  %v56 = vunpack.c.l.b16 %v35
  %v57 = vunpack.c.l.b16 %v36
  %v58 = vunpack.c.l.b16 %v37
  %v59 = vpack.c.b16 %v54, %v53
  %v60 = vpack.c.b16 %v56, %v55
  %v61 = vpack.c.b16 %v58, %v57
  %vm65 = vcmask 392192
  %v67 = vsel %vm65, %v46, 0
  %69 = vmatprep.subr.bf16.mxu0 0
  %70 = vmatpush1.bf16.msra.mxu0 0
  %71 = vmatprep.subr.bf16.mxu0 0
  %72 = vmatpush1.bf16.msra.mxu0 0
  %73 = vmatprep.subr.bf16.mxu0 0
  %74 = vmatpush1.bf16.msra.mxu0 0
  %75 = vmatprep.subr.bf16.mxu0 0
  %76 = vmatpush1.bf16.msra.mxu0 0
  %77 = vmatprep.subr.bf16.mxu0 0
  %78 = vmatpush1.bf16.msra.mxu0 0
  %79 = vmatprep.subr.bf16.mxu0 0
  %80 = vmatpush1.bf16.msra.mxu0 %v61
  %81 = vmatprep.subr.bf16.mxu0 0
  %82 = vmatpush1.bf16.msra.mxu0 %v60
  %83 = vmatprep.subr.bf16.mxu0 0
  %84 = vmatpush1.bf16.msra.mxu0 %v59
  %85 = vmatprep.subr.bf16.mxu0 0
  %86 = vmatpush2.bf16.msra.mxu0 0
  %87 = vmatprep.subr.bf16.mxu0 0
  %88 = vmatpush2.bf16.msra.mxu0 0
  %89 = vmatprep.subr.bf16.mxu0 0
  %90 = vmatpush2.bf16.msra.mxu0 0
  %91 = vmatprep.subr.bf16.mxu0 0
  %92 = vmatpush2.bf16.msra.mxu0 0
  %93 = vmatprep.subr.bf16.mxu0 0
  %94 = vmatpush2.bf16.msra.mxu0 0
  %95 = vmatprep.subr.bf16.mxu0 0
  %96 = vmatpush2.bf16.msra.mxu0 0
  %97 = vmatprep.subr.bf16.mxu0 0
  %98 = vmatpush2.bf16.msra.mxu0 0
  %99 = vmatprep.subr.bf16.mxu0 0
  %100 = vmatpush2.bf16.msra.mxu0 0
  %101 = vmatprep.mubr.bf16.mxu0 0
  %102 = vmatmul.mubr.bf16.gmra.mxu0 %v67
  %v103 = vpop.f32.mrf.mxu0
  %v104 = vadd.f32 %v41, %v103
  %v105 = vpop.f32.mrf.mxu0
  %v106 = vpop.f32.mrf.mxu0
  %v107 = vadd.f32 %v41, %v106
  %v108 = vpop.f32.mrf.mxu0
  %109 = vdwg.mxu0
  %vm110 = vcmp.gt.f32.partialorder %v104, 0.0
  %vm111 = vcmp.gt.f32.partialorder %v107, 0.0
  %v112 = vmul.f32 %v104, 1.442695
  %v113 = vpow.pop %v112
  %v114 = vmul.f32 %v107, 1.442695
  %v115 = vpow.pop %v114
  %v116 = vsub.f32 %v113, 1.0
  %v117 = vsub.f32 %v115, 1.0
  %v118 = vsel %vm110, %v104, %v116
  %v119 = vsel %vm111, %v107, %v117
  %v120 = vpack.c.bf16 %v119, %v118
  %v121 = vld [vmem:[%s2] sm:$0xf]
  %v122 = vld [vmem:[%s2 + $0x4] sm:$0xf]
  %v123 = vld [vmem:[%s2 + $0x8] sm:$0xf]
  %v124 = vld [vmem:[%s2 + $0xc] sm:$0xf]
  %v125 = vld [vmem:[%s2 + $0x10] sm:$0xf]
  %v126 = vld [vmem:[%s2 + $0x14] sm:$0xf]
  %v127 = vld [vmem:[%s2 + $0x18] sm:$0xf]
  %v128 = vld [vmem:[%s2 + $0x1c] sm:$0xf]
  %v129 = vld [vmem:[%s2 + $0x20] sm:$0xf]
  %v130 = vld [vmem:[%s2 + $0x24] sm:$0xf]
  %v131 = vld [vmem:[%s2 + $0x28] sm:$0xf]
  %v132 = vld [vmem:[%s2 + $0x2c] sm:$0xf]
  %v133 = vld [vmem:[%s2 + $0x30] sm:$0xf]
  %v134 = vld [vmem:[%s2 + $0x34] sm:$0xf]
  %v135 = vld [vmem:[%s2 + $0x38] sm:$0xf]
  %v136 = vld [vmem:[%s2 + $0x3c] sm:$0xf]
  %v137 = vlaneseq
  %v138 = vshrl.u32 %v137, 7
  %v139 = vsub.s32 0, %v138
  %v140 = vrot.slane %v27, %v139
  %v157 = vunpack.c.l.b16 %v121
  %v158 = vunpack.c.l.b16 %v122
  %v159 = vunpack.c.l.b16 %v123
  %v160 = vunpack.c.l.b16 %v124
  %v161 = vunpack.c.l.b16 %v125
  %v162 = vunpack.c.l.b16 %v126
  %v163 = vunpack.c.l.b16 %v127
  %v164 = vunpack.c.l.b16 %v128
  %v165 = vunpack.c.l.b16 %v129
  %v166 = vunpack.c.l.b16 %v130
  %v167 = vunpack.c.l.b16 %v131
  %v168 = vunpack.c.l.b16 %v132
  %v169 = vunpack.c.l.b16 %v133
  %v170 = vunpack.c.l.b16 %v134
  %v171 = vunpack.c.l.b16 %v135
  %v172 = vunpack.c.l.b16 %v136
  %v173 = vpack.c.b16 %v158, %v157
  %v174 = vpack.c.b16 %v160, %v159
  %v175 = vpack.c.b16 %v162, %v161
  %v176 = vpack.c.b16 %v164, %v163
  %v177 = vpack.c.b16 %v166, %v165
  %v178 = vpack.c.b16 %v168, %v167
  %v179 = vpack.c.b16 %v170, %v169
  %v180 = vpack.c.b16 %v172, %v171
  %189 = vmatprep.subr.bf16.mxu0 0
  %190 = vmatpush1.bf16.msra.mxu0 %v180
  %191 = vmatprep.subr.bf16.mxu0 0
  %192 = vmatpush1.bf16.msra.mxu0 %v179
  %193 = vmatprep.subr.bf16.mxu0 0
  %194 = vmatpush1.bf16.msra.mxu0 %v178
  %195 = vmatprep.subr.bf16.mxu0 0
  %196 = vmatpush1.bf16.msra.mxu0 %v177
  %197 = vmatprep.subr.bf16.mxu0 0
  %198 = vmatpush1.bf16.msra.mxu0 %v176
  %199 = vmatprep.subr.bf16.mxu0 0
  %200 = vmatpush1.bf16.msra.mxu0 %v175
  %201 = vmatprep.subr.bf16.mxu0 0
  %202 = vmatpush1.bf16.msra.mxu0 %v174
  %203 = vmatprep.subr.bf16.mxu0 0
  %204 = vmatpush1.bf16.msra.mxu0 %v173
  %205 = vmatprep.subr.bf16.mxu0 0
  %206 = vmatpush2.bf16.msra.mxu0 0
  %207 = vmatprep.subr.bf16.mxu0 0
  %208 = vmatpush2.bf16.msra.mxu0 0
  %209 = vmatprep.subr.bf16.mxu0 0
  %210 = vmatpush2.bf16.msra.mxu0 0
  %211 = vmatprep.subr.bf16.mxu0 0
  %212 = vmatpush2.bf16.msra.mxu0 0
  %213 = vmatprep.subr.bf16.mxu0 0
  %214 = vmatpush2.bf16.msra.mxu0 0
  %215 = vmatprep.subr.bf16.mxu0 0
  %216 = vmatpush2.bf16.msra.mxu0 0
  %217 = vmatprep.subr.bf16.mxu0 0
  %218 = vmatpush2.bf16.msra.mxu0 0
  %219 = vmatprep.subr.bf16.mxu0 0
  %220 = vmatpush2.bf16.msra.mxu0 0
  %221 = vmatprep.mubr.bf16.mxu0 0
  %222 = vmatmul.mubr.bf16.gmra.mxu0 %v120
  %v223 = vpop.f32.mrf.mxu0
  %v224 = vadd.f32 %v140, %v223
  %v225 = vpop.f32.mrf.mxu0
  %v226 = vpop.f32.mrf.mxu0
  %v227 = vadd.f32 %v140, %v226
  %v228 = vpop.f32.mrf.mxu0
  %229 = vdwg.mxu0
  %v230 = vpack.c.bf16 %v227, %v224
  %v231 = vld [vmem:[%s3] sm:$0xff]
  %v232 = vld [vmem:[%s3 + $0x8] sm:$0xff]
  %v233 = vld [vmem:[%s3 + $0x10] sm:$0xff]
  %v234 = vld [vmem:[%s3 + $0x18] sm:$0xff]
  %v235 = vld [vmem:[%s3 + $0x20] sm:$0xff]
  %v236 = vld [vmem:[%s3 + $0x28] sm:$0xff]
  %v237 = vld [vmem:[%s3 + $0x30] sm:$0xff]
  %v238 = vld [vmem:[%s3 + $0x38] sm:$0xff]
  %v239 = vld [vmem:[%s3 + $0x40] sm:$0xff]
  %v240 = vld [vmem:[%s3 + $0x48] sm:$0xff]
  %v241 = vld [vmem:[%s3 + $0x50] sm:$0xff]
  %v242 = vld [vmem:[%s3 + $0x58] sm:$0xff]
  %v243 = vld [vmem:[%s3 + $0x60] sm:$0xff]
  %v244 = vld [vmem:[%s3 + $0x68] sm:$0xff]
  %v245 = vld [vmem:[%s3 + $0x70] sm:$0xff]
  %v246 = vld [vmem:[%s3 + $0x78] sm:$0xff]
  %v263 = vunpack.c.l.b16 %v231
  %v264 = vunpack.c.h.b16 %v231
  %v265 = vunpack.c.l.b16 %v232
  %v266 = vunpack.c.h.b16 %v232
  %v267 = vunpack.c.l.b16 %v233
  %v268 = vunpack.c.h.b16 %v233
  %v269 = vunpack.c.l.b16 %v234
  %v270 = vunpack.c.h.b16 %v234
  %v271 = vunpack.c.l.b16 %v235
  %v272 = vunpack.c.h.b16 %v235
  %v273 = vunpack.c.l.b16 %v236
  %v274 = vunpack.c.h.b16 %v236
  %v275 = vunpack.c.l.b16 %v237
  %v276 = vunpack.c.h.b16 %v237
  %v277 = vunpack.c.l.b16 %v238
  %v278 = vunpack.c.h.b16 %v238
  %v279 = vunpack.c.l.b16 %v239
  %v280 = vunpack.c.h.b16 %v239
  %v281 = vunpack.c.l.b16 %v240
  %v282 = vunpack.c.h.b16 %v240
  %v283 = vunpack.c.l.b16 %v241
  %v284 = vunpack.c.h.b16 %v241
  %v285 = vunpack.c.l.b16 %v242
  %v286 = vunpack.c.h.b16 %v242
  %v287 = vunpack.c.l.b16 %v243
  %v288 = vunpack.c.h.b16 %v243
  %v289 = vunpack.c.l.b16 %v244
  %v290 = vunpack.c.h.b16 %v244
  %v291 = vunpack.c.l.b16 %v245
  %v292 = vunpack.c.h.b16 %v245
  %v293 = vunpack.c.l.b16 %v246
  %v294 = vunpack.c.h.b16 %v246
  %v295 = vpack.c.b16 %v265, %v263
  %v296 = vpack.c.b16 %v266, %v264
  %v297 = vpack.c.b16 %v269, %v267
  %v298 = vpack.c.b16 %v270, %v268
  %v299 = vpack.c.b16 %v273, %v271
  %v300 = vpack.c.b16 %v274, %v272
  %v301 = vpack.c.b16 %v277, %v275
  %v302 = vpack.c.b16 %v278, %v276
  %v303 = vpack.c.b16 %v281, %v279
  %v304 = vpack.c.b16 %v282, %v280
  %v305 = vpack.c.b16 %v285, %v283
  %v306 = vpack.c.b16 %v286, %v284
  %v307 = vpack.c.b16 %v289, %v287
  %v308 = vpack.c.b16 %v290, %v288
  %v309 = vpack.c.b16 %v293, %v291
  %v310 = vpack.c.b16 %v294, %v292
  %327 = vmatprep.subr.bf16.mxu0 %v310
  %328 = vmatpush1.bf16.msra.mxu0 %v309
  %329 = vmatprep.subr.bf16.mxu0 %v308
  %330 = vmatpush1.bf16.msra.mxu0 %v307
  %331 = vmatprep.subr.bf16.mxu0 %v306
  %332 = vmatpush1.bf16.msra.mxu0 %v305
  %333 = vmatprep.subr.bf16.mxu0 %v304
  %334 = vmatpush1.bf16.msra.mxu0 %v303
  %335 = vmatprep.subr.bf16.mxu0 %v302
  %336 = vmatpush1.bf16.msra.mxu0 %v301
  %337 = vmatprep.subr.bf16.mxu0 %v300
  %338 = vmatpush1.bf16.msra.mxu0 %v299
  %339 = vmatprep.subr.bf16.mxu0 %v298
  %340 = vmatpush1.bf16.msra.mxu0 %v297
  %341 = vmatprep.subr.bf16.mxu0 %v296
  %342 = vmatpush1.bf16.msra.mxu0 %v295
  %343 = vmatprep.subr.bf16.mxu0 0
  %344 = vmatpush2.bf16.msra.mxu0 0
  %345 = vmatprep.subr.bf16.mxu0 0
  %346 = vmatpush2.bf16.msra.mxu0 0
  %347 = vmatprep.subr.bf16.mxu0 0
  %348 = vmatpush2.bf16.msra.mxu0 0
  %349 = vmatprep.subr.bf16.mxu0 0
  %350 = vmatpush2.bf16.msra.mxu0 0
  %351 = vmatprep.subr.bf16.mxu0 0
  %352 = vmatpush2.bf16.msra.mxu0 0
  %353 = vmatprep.subr.bf16.mxu0 0
  %354 = vmatpush2.bf16.msra.mxu0 0
  %355 = vmatprep.subr.bf16.mxu0 0
  %356 = vmatpush2.bf16.msra.mxu0 0
  %357 = vmatprep.subr.bf16.mxu0 0
  %358 = vmatpush2.bf16.msra.mxu0 0
  %359 = vmatprep.mubr.bf16.mxu0 0
  %360 = vmatmul.mubr.bf16.gmra.mxu0 %v230
  %v361 = vpop.f32.mrf.mxu0
  %v362 = vadd.f32 0.0, %v361
  %v363 = vpop.f32.mrf.mxu0
  %v364 = vadd.f32 0.0, %v363
  %v365 = vpop.f32.mrf.mxu0
  %v366 = vadd.f32 0.0, %v365
  %v367 = vpop.f32.mrf.mxu0
  %v368 = vadd.f32 0.0, %v367
  %369 = vdwg.mxu0
  %v370 = vlaneseq
  %v371 = vshrl.u32 %v370, 7
  %v372 = vsub.s32 0, %v371
  %v373 = vrot.slane %v28, %v372
  %v374 = vadd.f32 %v362, %v373
  %v375 = vadd.f32 %v366, %v373
  %v376 = vlaneseq
  %v377 = vshrl.u32 %v376, 7
  %v378 = vsub.s32 0, %v377
  %v379 = vrot.slane %v29, %v378
  %v380 = vadd.f32 %v364, %v379
  %v381 = vadd.f32 %v368, %v379
  %v382 = vxor.u32 %v380, 2147483648
  %v383 = vxor.u32 %v381, 2147483648
  %v384 = vmul.f32 %v382, 1.442695
  %v385 = vpow.pop %v384
  %v386 = vmul.f32 %v383, 1.442695
  %v387 = vpow.pop %v386
  %v388 = vadd.f32 %v385, 1.0
  %v389 = vadd.f32 %v387, 1.0
  %v390 = vrcp.pop %v388
  %v391 = vmul.f32 1.0, %v390
  %v392 = vrcp.pop %v389
  %v393 = vmul.f32 1.0, %v392
  %v394 = vmul.f32 %v374, %v391
  %v395 = vmul.f32 %v375, %v393
  %v396 = vunpack.c.l.bf16 %v24
  %v397 = vunpack.c.l.bf16 %v25
  %vm398 = vcmask 261120
  %v399 = vsel %vm398, %v396, 0.0
  %v400 = vsel %vm398, %v397, 0.0
  %v401 = vadd.f32 %v394, %v399
  %v402 = vadd.f32 %v395, %v400
  %403 = vadd.xlane.f32.xlu0 %v401
  %v404 = vpop.xlane.xlu0 %403
  %405 = vadd.xlane.f32.xlu0 %v402
  %v406 = vpop.xlane.xlu0 %405
  %v407 = vmul.f32 %v404, 0.03125
  %v408 = vmul.f32 %v406, 0.03125
  %v409 = vsub.f32 %v401, %v407
  %v410 = vsub.f32 %v402, %v408
  %v411 = vlaneseq
  %v412 = vand.u32 %v411, 127
  %vm413 = vcmp.lt.s32.totalorder %v412, 32
  %v414 = vsel %vm413, %v409, 0.0
  %v415 = vsel %vm413, %v410, 0.0
  %v416 = vmul.f32 %v414, %v414
  %v417 = vmul.f32 %v415, %v415
  %418 = vadd.xlane.f32.xlu0 %v416
  %v419 = vpop.xlane.xlu0 %418
  %420 = vadd.xlane.f32.xlu0 %v417
  %v421 = vpop.xlane.xlu0 %420
  %v422 = vmul.f32 %v419, 0.03125
  %v423 = vmul.f32 %v421, 0.03125
  %v424 = vadd.f32 %v422, 1e-05
  %v425 = vadd.f32 %v423, 1e-05
  %v426 = vrsqrt.pop %v424
  %v427 = vrsqrt.pop %v425
  %v428 = vmul.f32 %v414, %v426
  %v429 = vmul.f32 %v415, %v427
  %v430 = vlaneseq
  %v431 = vshrl.u32 %v430, 7
  %v432 = vsub.s32 0, %v431
  %v433 = vrot.slane %v30, %v432
  %v434 = vmul.f32 %v428, %v433
  %v435 = vmul.f32 %v429, %v433
  %v436 = vlaneseq
  %v437 = vshrl.u32 %v436, 7
  %v438 = vsub.s32 0, %v437
  %v439 = vrot.slane %v31, %v438
  %v440 = vadd.f32 %v434, %v439
  %v441 = vadd.f32 %v435, %v439
  %442 = vst [vmem:[%s6] sm:$0xff] %v440
  %443 = vst [vmem:[%s6 + $0x8] sm:$0xff] %v441
  // Predicated region
  $region26: #{grn_forward.1} parent=0 // pred_check
    _
  $region27: #{grn_forward.1} parent=0 // pred_check_branch
    %445 = sbr.rel (0) target = $region29
  $region28: #{grn_forward.1} parent=0 // pred_region
    _
  $region29: #{grn_forward.1} parent=0 // pred_fallthru
    _
  // Predicated region
  $region30: #{grn_forward.1} parent=0 // pred_check
    _
  $region31: #{grn_forward.1} parent=0 // pred_check_branch
    %447 = sbr.rel (0) target = $region33
  $region32: #{grn_forward.1} parent=0 // pred_region
    _
  $region33: #{grn_forward.1} parent=0 // pred_fallthru
    _

</llo_original>
